<compile_context>
chip_gen: v5e
topology: v5e:2x2
jax: 0.10.0
libtpu: 0.0.40
codegen_flags: <defaults>
</compile_context>

<pallas_src>
import functools

import jax
import jax.numpy as jnp
from jax.experimental import pallas as pl
from jax.experimental.pallas import tpu as pltpu


NEG_SLOPE = 0.2  # nn.LeakyReLU(0.2) inside Conv2dBlock


def _lrelu(h):
    # For 0 < slope < 1: max(h, slope*h) == where(h >= 0, h, slope*h),
    # and it is one VALU op cheaper per element.
    return jnp.maximum(h, NEG_SLOPE * h)


def _sceneflow_kernel(t_ref, x_ref, w1x_ref, w1t_ref, w24_ref, w5_ref,
                      b14_ref, b5_ref, out_ref):
    """One pixel tile, channel-major: (C_in, tm) -> (C_out, tm).

    NOTE: hard-coded to the default 5-layer network (n_layers=3).
    Weights (bf16) and biases are VMEM-resident (constant index maps).
    """
    f32 = jnp.float32
    bf16 = jnp.bfloat16

    xx = x_ref[...].astype(bf16)          # (3, tm) bf16 -> MXU
    tt = t_ref[...]                       # (1, tm) f32 (VPU broadcast term)

    # ---- Layer 1: xyz columns on the MXU, t column on the VPU ----
    h32 = jnp.dot(w1x_ref[...], xx, preferred_element_type=f32)   # (32, tm) f32
    h32 = h32 + w1t_ref[...] * tt                                 # f32 rank-1 term
    h = _lrelu(h32.astype(bf16) + b14_ref[0])                     # bf16 from here on

    # ---- Layers 2..4: (32,32) bf16 matmuls, bf16 bias + lrelu ----
    for j in range(3):
        h = _lrelu(jnp.dot(w24_ref[j], h,
                           preferred_element_type=f32).astype(bf16)
                   + b14_ref[j + 1])

    # ---- Layer 5: linear head, f32 output ----
    out = jnp.dot(w5_ref[...], h, preferred_element_type=f32) + b5_ref[...]
    out_ref[...] = out.astype(out_ref.dtype)


def init_params(key, net_width=32, output_dim=3, n_layers=3, in_ch=4,
                dtype=jnp.float32):
    """Deterministic synthetic parameters.

    W stored as (C_out, C_in) — same orientation as the PyTorch conv weight
    (C_out, C_in, 1, 1) squeezed — and bias as (C_out, 1).
    """
    dims = [in_ch] + [net_width] * (n_layers + 1) + [output_dim]
    params = []
    for cin, cout in zip(dims[:-1], dims[1:]):
        key, kw, kb = jax.random.split(key, 3)
        scale = (2.0 / cin) ** 0.5
        w = (jax.random.normal(kw, (cout, cin), dtype=jnp.float32) * scale
             ).astype(dtype)
        b = (jax.random.normal(kb, (cout, 1), dtype=jnp.float32) * 0.01
             ).astype(dtype)
        params.append((w, b))
    return params


@functools.partial(jax.jit, static_argnames=("tile_m",))
def sceneflow_forward(x, t, params, tile_m=32768):
    """x: (N, 3, H, W), t: (N, 1, H, W) -> (N, 3, H, W)."""
    N, _, H, W = x.shape
    HW = H * W
    (w1, b1), (w2, b2), (w3, b3), (w4, b4), (w5, b5) = params
    out_dim = w5.shape[0]

    # Channel-major, pixel-on-lane views; free reshapes of contiguous NCHW.
    x3 = x.reshape(N, 3, HW)
    t3 = t.reshape(N, 1, HW)

    # Pixel tile: multiple of 128 lanes, big to amortize per-step overhead.
    # No HBM pad/slice: a partial final lane block is handled by Pallas
    # read/write masking (columns are independent, so garbage lanes are inert).
    HW_up = ((HW + 127) // 128) * 128
    tm = min(int(tile_m), HW_up)
    tm = max(128, (tm // 128) * 128)
    num_tiles = pl.cdiv(HW, tm)
    if N * num_tiles < 2 and HW_up >= 256:
        # keep >=2 grid steps so both v7x TensorCores get work
        tm = ((HW_up // 2 + 127) // 128) * 128
        num_tiles = pl.cdiv(HW, tm)
    if (N * num_tiles) % 2 == 1 and num_tiles < HW_up // 128:
        # best-effort even step count (v7x: 2 TensorCores share the grid)
        tm_alt = max(128, ((pl.cdiv(HW, num_tiles + 1) + 127) // 128) * 128)
        nt_alt = pl.cdiv(HW, tm_alt)
        if (N * nt_alt) % 2 == 0:
            tm, num_tiles = tm_alt, nt_alt

    bf16 = jnp.bfloat16
    # torch.cat([t, xyz], 1): channel 0 of W1 multiplies t, channels 1:4 xyz.
    w1t = w1[:, :1].astype(jnp.float32)       # f32: stays on the VPU path
    w1x = w1[:, 1:].astype(bf16)              # (32, 3) bf16 -> MXU
    w24 = jnp.stack([w2, w3, w4]).astype(bf16)        # (3, 32, 32)
    b14 = jnp.stack([b1, b2, b3, b4]).astype(bf16)    # (4, 32, 1)
    w5b = w5.astype(bf16)                             # (3, 32)
    b5f = b5.astype(jnp.float32)                      # (3, 1)

    weights = [w1x, w1t, w24, w5b, b14, b5f]
    weight_specs = [
        pl.BlockSpec(w1x.shape, lambda n, i: (0, 0)),
        pl.BlockSpec(w1t.shape, lambda n, i: (0, 0)),
        pl.BlockSpec(w24.shape, lambda n, i: (0, 0, 0)),
        pl.BlockSpec(w5b.shape, lambda n, i: (0, 0)),
        pl.BlockSpec(b14.shape, lambda n, i: (0, 0, 0)),
        pl.BlockSpec(b5f.shape, lambda n, i: (0, 0)),
    ]

    def pix_spec(c):
        return pl.BlockSpec((None, c, tm), lambda n, i: (n, 0, i))

    out3 = pl.pallas_call(
        _sceneflow_kernel,
        out_shape=jax.ShapeDtypeStruct((N, out_dim, HW), x.dtype),
        grid_spec=pltpu.PrefetchScalarGridSpec(
            num_scalar_prefetch=0,
            grid=(N, num_tiles),
            in_specs=[pix_spec(1), pix_spec(3)] + weight_specs,
            out_specs=pix_spec(out_dim),
        ),
        compiler_params=pltpu.CompilerParams(
            dimension_semantics=("parallel", "parallel"),
            vmem_limit_bytes=48 * 1024 * 1024),
    )(t3, x3, *weights)

    return out3.reshape(N, out_dim, H, W)


def _reference_forward(x, t, params):
    """Pure-JAX reference mirroring the kernel's bf16/f32 precision choices."""
    f32, bf16 = jnp.float32, jnp.bfloat16
    (w1, b1), (w2, b2), (w3, b3), (w4, b4), (w5, b5) = params
    N, _, H, W = x.shape
    HW = H * W
    xx = x.reshape(N, 3, HW).astype(bf16)
    tt = t.reshape(N, 1, HW).astype(f32)

    def dot(w, h):
        return jnp.einsum('oc,ncp->nop', w, h, preferred_element_type=f32)

    h32 = dot(w1[:, 1:].astype(bf16), xx)
    h32 = h32 + w1[:, :1].astype(f32)[None] * tt
    h = _lrelu(h32.astype(bf16) + b1.astype(bf16)[None])
    for w, b in ((w2, b2), (w3, b3), (w4, b4)):
        h = _lrelu(dot(w.astype(bf16), h).astype(bf16) + b.astype(bf16)[None])
    out = dot(w5.astype(bf16), h) + b5.astype(f32)[None]
    return out.reshape(N, w5.shape[0], H, W).astype(x.dtype)


if __name__ == "__main__":
    key = jax.random.PRNGKey(0)
    kx, kt, kp = jax.random.split(key, 3)

    N, H, W = 2, 16, 16
    x = jax.random.normal(kx, (N, 3, H, W), dtype=jnp.float32)   # xyz map
    t = jax.random.normal(kt, (N, 1, H, W), dtype=jnp.float32)   # time map

    params = init_params(kp)

    out = sceneflow_forward(x, t, params)
    out = jax.block_until_ready(out)
    assert out.shape == (N, 3, H, W), out.shape

    ref = _reference_forward(x, t, params)
    err = float(jnp.max(jnp.abs(out - ref)))
    assert err < 2e-2, err

    print("KERNEL_OK")
</pallas_src>

<mosaic_0001>
module attributes {stable_mosaic.version = 11 : i64} {
  func.func @_sceneflow_kernel(%arg0: i32, %arg1: i32, %arg2: memref<1x1x256xf32, #tpu.memory_space<vmem>>, %arg3: memref<1x3x256xf32, #tpu.memory_space<vmem>>, %arg4: memref<32x3xbf16, #tpu.memory_space<vmem>>, %arg5: memref<32x1xf32, #tpu.memory_space<vmem>>, %arg6: memref<3x32x32xbf16, #tpu.memory_space<vmem>>, %arg7: memref<3x32xbf16, #tpu.memory_space<vmem>>, %arg8: memref<4x32x1xbf16, #tpu.memory_space<vmem>>, %arg9: memref<3x1xf32, #tpu.memory_space<vmem>>, %arg10: memref<1x3x256xf32, #tpu.memory_space<vmem>>) attributes {dimension_semantics = [#tpu.dimension_semantics<parallel>, #tpu.dimension_semantics<parallel>], iteration_bounds = array<i64: 2, 1>, scalar_prefetch = 0 : i64, scratch_operands = 0 : i64, tpu.core_type = #tpu.core_type<tc>, window_params = [{transform_indices = @transform_0, window_bounds = array<i64: 1, 1, 256>}, {transform_indices = @transform_1, window_bounds = array<i64: 1, 3, 256>}, {pipeline_mode = #tpu.pipeline_mode<synchronous>, transform_indices = @transform_2, window_bounds = array<i64: 32, 3>}, {pipeline_mode = #tpu.pipeline_mode<synchronous>, transform_indices = @transform_3, window_bounds = array<i64: 32, 1>}, {pipeline_mode = #tpu.pipeline_mode<synchronous>, transform_indices = @transform_4, window_bounds = array<i64: 3, 32, 32>}, {pipeline_mode = #tpu.pipeline_mode<synchronous>, transform_indices = @transform_5, window_bounds = array<i64: 3, 32>}, {pipeline_mode = #tpu.pipeline_mode<synchronous>, transform_indices = @transform_6, window_bounds = array<i64: 4, 32, 1>}, {pipeline_mode = #tpu.pipeline_mode<synchronous>, transform_indices = @transform_7, window_bounds = array<i64: 3, 1>}, {transform_indices = @transform_8, window_bounds = array<i64: 1, 3, 256>}]} {
    %c0 = arith.constant 0 : index
    %c0_0 = arith.constant 0 : index
    %c0_1 = arith.constant 0 : index
    %0 = vector.load %arg3[%c0, %c0_0, %c0_1] : memref<1x3x256xf32, #tpu.memory_space<vmem>>, vector<1x3x256xf32>
    %1 = vector.shape_cast %0 : vector<1x3x256xf32> to vector<3x256xf32>
    %2 = arith.truncf %1 : vector<3x256xf32> to vector<3x256xbf16>
    %c0_2 = arith.constant 0 : index
    %c0_3 = arith.constant 0 : index
    %c0_4 = arith.constant 0 : index
    %3 = vector.load %arg2[%c0_2, %c0_3, %c0_4] : memref<1x1x256xf32, #tpu.memory_space<vmem>>, vector<1x1x256xf32>
    %4 = vector.shape_cast %3 : vector<1x1x256xf32> to vector<1x256xf32>
    %c0_5 = arith.constant 0 : index
    %c0_6 = arith.constant 0 : index
    %5 = vector.load %arg4[%c0_5, %c0_6] : memref<32x3xbf16, #tpu.memory_space<vmem>>, vector<32x3xbf16>
    %cst = arith.constant dense<0.000000e+00> : vector<32x256xf32>
    %6 = tpu.matmul %5, %2, %cst {dimension_numbers = #tpu.dot_dimension_numbers<[1], [0], [0], [1], [0, 0, 1, 1], [], []>} : vector<32x3xbf16>, vector<3x256xbf16>, vector<32x256xf32> -> vector<32x256xf32>
    %c0_7 = arith.constant 0 : index
    %c0_8 = arith.constant 0 : index
    %7 = vector.load %arg5[%c0_7, %c0_8] : memref<32x1xf32, #tpu.memory_space<vmem>>, vector<32x1xf32>
    %8 = vector.broadcast %7 : vector<32x1xf32> to vector<32x256xf32>
    %9 = vector.broadcast %4 : vector<1x256xf32> to vector<32x256xf32>
    %10 = arith.mulf %8, %9 : vector<32x256xf32>
    %11 = arith.addf %6, %10 : vector<32x256xf32>
    %12 = arith.truncf %11 : vector<32x256xf32> to vector<32x256xbf16>
    %c0_9 = arith.constant 0 : index
    %c0_10 = arith.constant 0 : index
    %c0_11 = arith.constant 0 : index
    %13 = vector.load %arg8[%c0_9, %c0_10, %c0_11] : memref<4x32x1xbf16, #tpu.memory_space<vmem>>, vector<1x32x1xbf16>
    %14 = vector.shape_cast %13 : vector<1x32x1xbf16> to vector<32x1xbf16>
    %15 = vector.broadcast %14 : vector<32x1xbf16> to vector<32x256xbf16>
    %16 = arith.addf %12, %15 : vector<32x256xbf16>
    %cst_12 = arith.constant 2.001950e-01 : bf16
    %17 = vector.broadcast %cst_12 : bf16 to vector<32x256xbf16>
    %18 = arith.mulf %17, %16 : vector<32x256xbf16>
    %19 = arith.maximumf %16, %18 : vector<32x256xbf16>
    %c0_13 = arith.constant 0 : index
    %c0_14 = arith.constant 0 : index
    %c0_15 = arith.constant 0 : index
    %20 = vector.load %arg6[%c0_13, %c0_14, %c0_15] : memref<3x32x32xbf16, #tpu.memory_space<vmem>>, vector<1x32x32xbf16>
    %21 = vector.shape_cast %20 : vector<1x32x32xbf16> to vector<32x32xbf16>
    %cst_16 = arith.constant dense<0.000000e+00> : vector<32x256xf32>
    %22 = tpu.matmul %21, %19, %cst_16 {dimension_numbers = #tpu.dot_dimension_numbers<[1], [0], [0], [1], [0, 0, 1, 1], [], []>} : vector<32x32xbf16>, vector<32x256xbf16>, vector<32x256xf32> -> vector<32x256xf32>
    %23 = arith.truncf %22 : vector<32x256xf32> to vector<32x256xbf16>
    %c1 = arith.constant 1 : index
    %c0_17 = arith.constant 0 : index
    %c0_18 = arith.constant 0 : index
    %24 = vector.load %arg8[%c1, %c0_17, %c0_18] : memref<4x32x1xbf16, #tpu.memory_space<vmem>>, vector<1x32x1xbf16>
    %25 = vector.shape_cast %24 : vector<1x32x1xbf16> to vector<32x1xbf16>
    %26 = vector.broadcast %25 : vector<32x1xbf16> to vector<32x256xbf16>
    %27 = arith.addf %23, %26 : vector<32x256xbf16>
    %cst_19 = arith.constant 2.001950e-01 : bf16
    %28 = vector.broadcast %cst_19 : bf16 to vector<32x256xbf16>
    %29 = arith.mulf %28, %27 : vector<32x256xbf16>
    %30 = arith.maximumf %27, %29 : vector<32x256xbf16>
    %c1_20 = arith.constant 1 : index
    %c0_21 = arith.constant 0 : index
    %c0_22 = arith.constant 0 : index
    %31 = vector.load %arg6[%c1_20, %c0_21, %c0_22] : memref<3x32x32xbf16, #tpu.memory_space<vmem>>, vector<1x32x32xbf16>
    %32 = vector.shape_cast %31 : vector<1x32x32xbf16> to vector<32x32xbf16>
    %cst_23 = arith.constant dense<0.000000e+00> : vector<32x256xf32>
    %33 = tpu.matmul %32, %30, %cst_23 {dimension_numbers = #tpu.dot_dimension_numbers<[1], [0], [0], [1], [0, 0, 1, 1], [], []>} : vector<32x32xbf16>, vector<32x256xbf16>, vector<32x256xf32> -> vector<32x256xf32>
    %34 = arith.truncf %33 : vector<32x256xf32> to vector<32x256xbf16>
    %c2 = arith.constant 2 : index
    %c0_24 = arith.constant 0 : index
    %c0_25 = arith.constant 0 : index
    %35 = vector.load %arg8[%c2, %c0_24, %c0_25] : memref<4x32x1xbf16, #tpu.memory_space<vmem>>, vector<1x32x1xbf16>
    %36 = vector.shape_cast %35 : vector<1x32x1xbf16> to vector<32x1xbf16>
    %37 = vector.broadcast %36 : vector<32x1xbf16> to vector<32x256xbf16>
    %38 = arith.addf %34, %37 : vector<32x256xbf16>
    %cst_26 = arith.constant 2.001950e-01 : bf16
    %39 = vector.broadcast %cst_26 : bf16 to vector<32x256xbf16>
    %40 = arith.mulf %39, %38 : vector<32x256xbf16>
    %41 = arith.maximumf %38, %40 : vector<32x256xbf16>
    %c2_27 = arith.constant 2 : index
    %c0_28 = arith.constant 0 : index
    %c0_29 = arith.constant 0 : index
    %42 = vector.load %arg6[%c2_27, %c0_28, %c0_29] : memref<3x32x32xbf16, #tpu.memory_space<vmem>>, vector<1x32x32xbf16>
    %43 = vector.shape_cast %42 : vector<1x32x32xbf16> to vector<32x32xbf16>
    %cst_30 = arith.constant dense<0.000000e+00> : vector<32x256xf32>
    %44 = tpu.matmul %43, %41, %cst_30 {dimension_numbers = #tpu.dot_dimension_numbers<[1], [0], [0], [1], [0, 0, 1, 1], [], []>} : vector<32x32xbf16>, vector<32x256xbf16>, vector<32x256xf32> -> vector<32x256xf32>
    %45 = arith.truncf %44 : vector<32x256xf32> to vector<32x256xbf16>
    %c3 = arith.constant 3 : index
    %c0_31 = arith.constant 0 : index
    %c0_32 = arith.constant 0 : index
    %46 = vector.load %arg8[%c3, %c0_31, %c0_32] : memref<4x32x1xbf16, #tpu.memory_space<vmem>>, vector<1x32x1xbf16>
    %47 = vector.shape_cast %46 : vector<1x32x1xbf16> to vector<32x1xbf16>
    %48 = vector.broadcast %47 : vector<32x1xbf16> to vector<32x256xbf16>
    %49 = arith.addf %45, %48 : vector<32x256xbf16>
    %cst_33 = arith.constant 2.001950e-01 : bf16
    %50 = vector.broadcast %cst_33 : bf16 to vector<32x256xbf16>
    %51 = arith.mulf %50, %49 : vector<32x256xbf16>
    %52 = arith.maximumf %49, %51 : vector<32x256xbf16>
    %c0_34 = arith.constant 0 : index
    %c0_35 = arith.constant 0 : index
    %53 = vector.load %arg7[%c0_34, %c0_35] : memref<3x32xbf16, #tpu.memory_space<vmem>>, vector<3x32xbf16>
    %cst_36 = arith.constant dense<0.000000e+00> : vector<3x256xf32>
    %54 = tpu.matmul %53, %52, %cst_36 {dimension_numbers = #tpu.dot_dimension_numbers<[1], [0], [0], [1], [0, 0, 1, 1], [], []>} : vector<3x32xbf16>, vector<32x256xbf16>, vector<3x256xf32> -> vector<3x256xf32>
    %c0_37 = arith.constant 0 : index
    %c0_38 = arith.constant 0 : index
    %55 = vector.load %arg9[%c0_37, %c0_38] : memref<3x1xf32, #tpu.memory_space<vmem>>, vector<3x1xf32>
    %56 = vector.broadcast %55 : vector<3x1xf32> to vector<3x256xf32>
    %57 = arith.addf %54, %56 : vector<3x256xf32>
    %c0_39 = arith.constant 0 : index
    %c0_40 = arith.constant 0 : index
    %c0_41 = arith.constant 0 : index
    %58 = vector.load %arg10[%c0_39, %c0_40, %c0_41] : memref<1x3x256xf32, #tpu.memory_space<vmem>>, vector<1x3x256xf32>
    %59 = vector.shape_cast %58 : vector<1x3x256xf32> to vector<3x256xf32>
    %60 = vector.shape_cast %57 : vector<3x256xf32> to vector<1x3x256xf32>
    tpu.vector_store %arg10[%c0_39, %c0_40, %c0_41], %60 {strides = array<i32>} : memref<1x3x256xf32, #tpu.memory_space<vmem>>, vector<1x3x256xf32>,
    return
  }
  func.func @transform_0(%arg0: i32, %arg1: i32) -> (i32, i32, i32) {
    %c0_i32 = arith.constant 0 : i32
    %c0_i32_0 = arith.constant 0 : i32
    return %arg0, %c0_i32, %arg1 : i32, i32, i32
  }
  func.func @transform_1(%arg0: i32, %arg1: i32) -> (i32, i32, i32) {
    %c0_i32 = arith.constant 0 : i32
    %c0_i32_0 = arith.constant 0 : i32
    return %arg0, %c0_i32, %arg1 : i32, i32, i32
  }
  func.func @transform_2(%arg0: i32, %arg1: i32) -> (i32, i32) {
    %c0_i32 = arith.constant 0 : i32
    %c0_i32_0 = arith.constant 0 : i32
    %c0_i32_1 = arith.constant 0 : i32
    return %c0_i32, %c0_i32_0 : i32, i32
  }
  func.func @transform_3(%arg0: i32, %arg1: i32) -> (i32, i32) {
    %c0_i32 = arith.constant 0 : i32
    %c0_i32_0 = arith.constant 0 : i32
    %c0_i32_1 = arith.constant 0 : i32
    return %c0_i32, %c0_i32_0 : i32, i32
  }
  func.func @transform_4(%arg0: i32, %arg1: i32) -> (i32, i32, i32) {
    %c0_i32 = arith.constant 0 : i32
    %c0_i32_0 = arith.constant 0 : i32
    %c0_i32_1 = arith.constant 0 : i32
    %c0_i32_2 = arith.constant 0 : i32
    return %c0_i32, %c0_i32_0, %c0_i32_1 : i32, i32, i32
  }
  func.func @transform_5(%arg0: i32, %arg1: i32) -> (i32, i32) {
    %c0_i32 = arith.constant 0 : i32
    %c0_i32_0 = arith.constant 0 : i32
    %c0_i32_1 = arith.constant 0 : i32
    return %c0_i32, %c0_i32_0 : i32, i32
  }
  func.func @transform_6(%arg0: i32, %arg1: i32) -> (i32, i32, i32) {
    %c0_i32 = arith.constant 0 : i32
    %c0_i32_0 = arith.constant 0 : i32
    %c0_i32_1 = arith.constant 0 : i32
    %c0_i32_2 = arith.constant 0 : i32
    return %c0_i32, %c0_i32_0, %c0_i32_1 : i32, i32, i32
  }
  func.func @transform_7(%arg0: i32, %arg1: i32) -> (i32, i32) {
    %c0_i32 = arith.constant 0 : i32
    %c0_i32_0 = arith.constant 0 : i32
    %c0_i32_1 = arith.constant 0 : i32
    return %c0_i32, %c0_i32_0 : i32, i32
  }
  func.func @transform_8(%arg0: i32, %arg1: i32) -> (i32, i32, i32) {
    %c0_i32 = arith.constant 0 : i32
    %c0_i32_0 = arith.constant 0 : i32
    return %arg0, %c0_i32, %arg1 : i32, i32, i32
  }
}

</mosaic_0001>

<llo_original>
// kernel: sceneflow_forward.1
$region0: #{sceneflow_forward.1}
  #allocation0 [shape = 'u32[]', space=smem, size = 0x4, offset = 0x4, fixed_abs, tag = 'smem constant byte address 0x4 - core index']
  #allocation1 [shape = 'u32[72,128]{1,0:T(1,128)}', space=vmem, size = 0x9000, scoped, tag = 'internal scratch']
  %s0 = inlined_call_operand.vmem [shape: f32[2,1,256], index: 0, kind: input, shape index: {}]
  %s1 = inlined_call_operand.vmem [shape: f32[2,3,256], index: 1, kind: input, shape index: {}]
  %s2 = inlined_call_operand.vmem [shape: bf16[32,3], index: 2, kind: input, shape index: {}]
  %s3 = inlined_call_operand.vmem [shape: f32[32,1], index: 3, kind: input, shape index: {}]
  %s4 = inlined_call_operand.vmem [shape: bf16[3,32,32], index: 4, kind: input, shape index: {}]
  %s5 = inlined_call_operand.vmem [shape: bf16[3,32], index: 5, kind: input, shape index: {}]
  %s6 = inlined_call_operand.vmem [shape: bf16[4,32,1], index: 6, kind: input, shape index: {}]
  %s7 = inlined_call_operand.vmem [shape: f32[3,1], index: 7, kind: input, shape index: {}]
  %s8 = inlined_call_operand.vmem [shape: f32[2,3,256], index: 8, kind: output, shape index: {}]
  %s9 = sld [smem:[#allocation0]]
  $region65: #{sceneflow_forward.1} parent=0
    _
  %s11 = ssub.s32 1, %s9
  %s12 = scalar_select 0, %s11, %s9
  loop: start=0, step=1, limit=4
  $region2: #{sceneflow_forward.1} parent=0 // loop_pre_header
    _
  $region3: #{sceneflow_forward.1} parent=0 // loop_header
    %s14 = sphi 0, %s18
    %p15 = scmp.ge.s32.totalorder %s14, 4
    %s21 = sphi 0, %s33
    %s22 = sphi 0, %s29
    %s23 = sphi 0, %s21
    %s24 = sphi 0, %s22
    %s25 = sphi 0, %s23
    %s26 = sphi 0, %s24
    %s38 = sphi 0, %s40
    %s41 = sphi 0, %s38
    %s42 = sphi 0, %s41
    %s58 = sphi 0, %s42
    %s66 = sphi 0, %s68
    %s69 = sphi 0, %s66
    %s70 = sphi 0, %s69
    %s86 = sphi 0, %s70
    %s90 = sphi 0, %s90
    %s92 = sphi 0, %s90
    %s93 = sphi 0, %s92
    %s107 = sphi 0, %s93
    %s111 = sphi 0, %s111
    %s113 = sphi 0, %s111
    %s114 = sphi 0, %s113
    %s128 = sphi 0, %s114
    %s132 = sphi 0, %s132
    %s134 = sphi 0, %s132
    %s135 = sphi 0, %s134
    %s149 = sphi 0, %s135
    %s153 = sphi 0, %s153
    %s155 = sphi 0, %s153
    %s156 = sphi 0, %s155
    %s170 = sphi 0, %s156
    %s174 = sphi 0, %s174
    %s176 = sphi 0, %s174
    %s177 = sphi 0, %s176
    %s191 = sphi 0, %s177
    %s195 = sphi 0, %s195
    %s197 = sphi 0, %s195
    %s198 = sphi 0, %s197
    %s212 = sphi 0, %s198
    %s220 = sphi 0, %s222
    %s223 = sphi 0, %s220
    %s224 = sphi 0, %s223
    %s240 = sphi 0, %s224
  $region4: #{sceneflow_forward.1} parent=0 // loop_header_branch
    %17 = sbr.rel (%p15) target = $region8
  $region5: #{sceneflow_forward.1} parent=0 // loop_body
    %s19 = ssub.s32 %s14, 1
    %s20 = ssub.s32 %s14, 2
    %s27 = sadd.s32 1, %s22
    %p28 = scmp.ge.s32.totalorder %s27, 1
    %s29 = scalar_select %p28, 0, %s27
    %s30 = sadd.s32 1, %s21
    %s31 = scalar_select %p28, %s30, %s21
    %p32 = scmp.ge.s32.totalorder %s31, 2
    %s33 = scalar_select %p32, 0, %s31
    %s34 = ssub.s32 %s21, %s33
    %s35 = ssub.s32 %s22, %s29
    %s36 = sor.u32 %s34, %s35
    %p37 = scmp.eq.s32.totalorder %s36, 0
    %s39 = sadd.s32 %s38, 1
    %s40 = scalar_select %p37, %s38, %s39
    %p43 = pneg %p37
    %p44 = scmp.eq.s32.totalorder %s14, 1
    %p45 = por %p43, %p44
    %p46 = scmp.ne.s32.totalorder %s38, %s41
    %p47 = scmp.eq.s32.totalorder %s14, 0
    %p48 = por %p46, %p47
    %p49 = scmp.ne.s32.totalorder %s38, %s41
    %p50 = scmp.eq.s32.totalorder %s19, 1
    %p51 = por %p49, %p50
    %p52 = scmp.ne.s32.totalorder %s41, %s42
    %p53 = scmp.eq.s32.totalorder %s19, 0
    %p54 = por %p52, %p53
    %p55 = scmp.ne.s32.totalorder %s41, %s42
    %p56 = scmp.eq.s32.totalorder %s20, 1
    %p57 = por %p55, %p56
    %p59 = scmp.ne.s32.totalorder %s42, %s58
    %p60 = scmp.eq.s32.totalorder %s20, 0
    %p61 = por %p59, %p60
    %s62 = ssub.s32 %s21, %s33
    %s63 = ssub.s32 %s22, %s29
    %s64 = sor.u32 %s62, %s63
    %p65 = scmp.eq.s32.totalorder %s64, 0
    %s67 = sadd.s32 %s66, 1
    %s68 = scalar_select %p65, %s66, %s67
    %p71 = pneg %p65
    %p72 = scmp.eq.s32.totalorder %s14, 1
    %p73 = por %p71, %p72
    %p74 = scmp.ne.s32.totalorder %s66, %s69
    %p75 = scmp.eq.s32.totalorder %s14, 0
    %p76 = por %p74, %p75
    %p77 = scmp.ne.s32.totalorder %s66, %s69
    %p78 = scmp.eq.s32.totalorder %s19, 1
    %p79 = por %p77, %p78
    %p80 = scmp.ne.s32.totalorder %s69, %s70
    %p81 = scmp.eq.s32.totalorder %s19, 0
    %p82 = por %p80, %p81
    %p83 = scmp.ne.s32.totalorder %s69, %s70
    %p84 = scmp.eq.s32.totalorder %s20, 1
    %p85 = por %p83, %p84
    %p87 = scmp.ne.s32.totalorder %s70, %s86
    %p88 = scmp.eq.s32.totalorder %s20, 0
    %p89 = por %p87, %p88
    %s91 = sadd.s32 %s90, 1
    %p94 = scmp.eq.s32.totalorder %s14, 1
    %p95 = scmp.ne.s32.totalorder %s90, %s92
    %p96 = scmp.eq.s32.totalorder %s14, 0
    %p97 = por %p95, %p96
    %p98 = scmp.ne.s32.totalorder %s90, %s92
    %p99 = scmp.eq.s32.totalorder %s19, 1
    %p100 = por %p98, %p99
    %p101 = scmp.ne.s32.totalorder %s92, %s93
    %p102 = scmp.eq.s32.totalorder %s19, 0
    %p103 = por %p101, %p102
    %p104 = scmp.ne.s32.totalorder %s92, %s93
    %p105 = scmp.eq.s32.totalorder %s20, 1
    %p106 = por %p104, %p105
    %p108 = scmp.ne.s32.totalorder %s93, %s107
    %p109 = scmp.eq.s32.totalorder %s20, 0
    %p110 = por %p108, %p109
    %s112 = sadd.s32 %s111, 1
    %p115 = scmp.eq.s32.totalorder %s14, 1
    %p116 = scmp.ne.s32.totalorder %s111, %s113
    %p117 = scmp.eq.s32.totalorder %s14, 0
    %p118 = por %p116, %p117
    %p119 = scmp.ne.s32.totalorder %s111, %s113
    %p120 = scmp.eq.s32.totalorder %s19, 1
    %p121 = por %p119, %p120
    %p122 = scmp.ne.s32.totalorder %s113, %s114
    %p123 = scmp.eq.s32.totalorder %s19, 0
    %p124 = por %p122, %p123
    %p125 = scmp.ne.s32.totalorder %s113, %s114
    %p126 = scmp.eq.s32.totalorder %s20, 1
    %p127 = por %p125, %p126
    %p129 = scmp.ne.s32.totalorder %s114, %s128
    %p130 = scmp.eq.s32.totalorder %s20, 0
    %p131 = por %p129, %p130
    %s133 = sadd.s32 %s132, 1
    %p136 = scmp.eq.s32.totalorder %s14, 1
    %p137 = scmp.ne.s32.totalorder %s132, %s134
    %p138 = scmp.eq.s32.totalorder %s14, 0
    %p139 = por %p137, %p138
    %p140 = scmp.ne.s32.totalorder %s132, %s134
    %p141 = scmp.eq.s32.totalorder %s19, 1
    %p142 = por %p140, %p141
    %p143 = scmp.ne.s32.totalorder %s134, %s135
    %p144 = scmp.eq.s32.totalorder %s19, 0
    %p145 = por %p143, %p144
    %p146 = scmp.ne.s32.totalorder %s134, %s135
    %p147 = scmp.eq.s32.totalorder %s20, 1
    %p148 = por %p146, %p147
    %p150 = scmp.ne.s32.totalorder %s135, %s149
    %p151 = scmp.eq.s32.totalorder %s20, 0
    %p152 = por %p150, %p151
    %s154 = sadd.s32 %s153, 1
    %p157 = scmp.eq.s32.totalorder %s14, 1
    %p158 = scmp.ne.s32.totalorder %s153, %s155
    %p159 = scmp.eq.s32.totalorder %s14, 0
    %p160 = por %p158, %p159
    %p161 = scmp.ne.s32.totalorder %s153, %s155
    %p162 = scmp.eq.s32.totalorder %s19, 1
    %p163 = por %p161, %p162
    %p164 = scmp.ne.s32.totalorder %s155, %s156
    %p165 = scmp.eq.s32.totalorder %s19, 0
    %p166 = por %p164, %p165
    %p167 = scmp.ne.s32.totalorder %s155, %s156
    %p168 = scmp.eq.s32.totalorder %s20, 1
    %p169 = por %p167, %p168
    %p171 = scmp.ne.s32.totalorder %s156, %s170
    %p172 = scmp.eq.s32.totalorder %s20, 0
    %p173 = por %p171, %p172
    %s175 = sadd.s32 %s174, 1
    %p178 = scmp.eq.s32.totalorder %s14, 1
    %p179 = scmp.ne.s32.totalorder %s174, %s176
    %p180 = scmp.eq.s32.totalorder %s14, 0
    %p181 = por %p179, %p180
    %p182 = scmp.ne.s32.totalorder %s174, %s176
    %p183 = scmp.eq.s32.totalorder %s19, 1
    %p184 = por %p182, %p183
    %p185 = scmp.ne.s32.totalorder %s176, %s177
    %p186 = scmp.eq.s32.totalorder %s19, 0
    %p187 = por %p185, %p186
    %p188 = scmp.ne.s32.totalorder %s176, %s177
    %p189 = scmp.eq.s32.totalorder %s20, 1
    %p190 = por %p188, %p189
    %p192 = scmp.ne.s32.totalorder %s177, %s191
    %p193 = scmp.eq.s32.totalorder %s20, 0
    %p194 = por %p192, %p193
    %s196 = sadd.s32 %s195, 1
    %p199 = scmp.eq.s32.totalorder %s14, 1
    %p200 = scmp.ne.s32.totalorder %s195, %s197
    %p201 = scmp.eq.s32.totalorder %s14, 0
    %p202 = por %p200, %p201
    %p203 = scmp.ne.s32.totalorder %s195, %s197
    %p204 = scmp.eq.s32.totalorder %s19, 1
    %p205 = por %p203, %p204
    %p206 = scmp.ne.s32.totalorder %s197, %s198
    %p207 = scmp.eq.s32.totalorder %s19, 0
    %p208 = por %p206, %p207
    %p209 = scmp.ne.s32.totalorder %s197, %s198
    %p210 = scmp.eq.s32.totalorder %s20, 1
    %p211 = por %p209, %p210
    %p213 = scmp.ne.s32.totalorder %s198, %s212
    %p214 = scmp.eq.s32.totalorder %s20, 0
    %p215 = por %p213, %p214
    %s216 = ssub.s32 %s21, %s33
    %s217 = ssub.s32 %s22, %s29
    %s218 = sor.u32 %s216, %s217
    %p219 = scmp.eq.s32.totalorder %s218, 0
    %s221 = sadd.s32 %s220, 1
    %s222 = scalar_select %p219, %s220, %s221
    %p225 = pneg %p219
    %p226 = scmp.eq.s32.totalorder %s14, 1
    %p227 = por %p225, %p226
    %p228 = scmp.ne.s32.totalorder %s220, %s223
    %p229 = scmp.eq.s32.totalorder %s14, 0
    %p230 = por %p228, %p229
    %p231 = scmp.ne.s32.totalorder %s220, %s223
    %p232 = scmp.eq.s32.totalorder %s19, 1
    %p233 = por %p231, %p232
    %p234 = scmp.ne.s32.totalorder %s223, %s224
    %p235 = scmp.eq.s32.totalorder %s19, 0
    %p236 = por %p234, %p235
    %p237 = scmp.ne.s32.totalorder %s223, %s224
    %p238 = scmp.eq.s32.totalorder %s20, 1
    %p239 = por %p237, %p238
    %p241 = scmp.ne.s32.totalorder %s224, %s240
    %p242 = scmp.eq.s32.totalorder %s20, 0
    %p243 = por %p241, %p242
    %p244 = scmp.le.s32.totalorder 1, %s14
    %p245 = scmp.lt.s32.totalorder %s14, 3
    %p246 = pnand %p244, %p245
    %p247 = pneg %p246
    // Predicated region
    $region9: #{sceneflow_forward.1} parent=5 // pred_check
      _
    $region10: #{sceneflow_forward.1} parent=5 // pred_check_branch
      %249 = sbr.rel (%p246) target = $region12
    $region11: #{sceneflow_forward.1} parent=5 // pred_region
      %s250 = ssub.s32 %s14, 1
      // Predicated region
      $region13: #{sceneflow_forward.1} parent=11 // pred_check
        %p251 = pneg %p103
      $region14: #{sceneflow_forward.1} parent=11 // pred_check_branch
        %253 = sbr.rel (%p251) target = $region16
      $region15: #{sceneflow_forward.1} parent=11 // pred_region
        _
      $region16: #{sceneflow_forward.1} parent=11 // pred_fallthru
        _
      // Predicated region
      $region17: #{sceneflow_forward.1} parent=11 // pred_check
        %p254 = pneg %p124
      $region18: #{sceneflow_forward.1} parent=11 // pred_check_branch
        %256 = sbr.rel (%p254) target = $region20
      $region19: #{sceneflow_forward.1} parent=11 // pred_region
        _
      $region20: #{sceneflow_forward.1} parent=11 // pred_fallthru
        _
      // Predicated region
      $region21: #{sceneflow_forward.1} parent=11 // pred_check
        %p257 = pneg %p145
      $region22: #{sceneflow_forward.1} parent=11 // pred_check_branch
        %259 = sbr.rel (%p257) target = $region24
      $region23: #{sceneflow_forward.1} parent=11 // pred_region
        _
      $region24: #{sceneflow_forward.1} parent=11 // pred_fallthru
        _
      // Predicated region
      $region25: #{sceneflow_forward.1} parent=11 // pred_check
        %p260 = pneg %p166
      $region26: #{sceneflow_forward.1} parent=11 // pred_check_branch
        %262 = sbr.rel (%p260) target = $region28
      $region27: #{sceneflow_forward.1} parent=11 // pred_region
        _
      $region28: #{sceneflow_forward.1} parent=11 // pred_fallthru
        _
      // Predicated region
      $region29: #{sceneflow_forward.1} parent=11 // pred_check
        %p263 = pneg %p187
      $region30: #{sceneflow_forward.1} parent=11 // pred_check_branch
        %265 = sbr.rel (%p263) target = $region32
      $region31: #{sceneflow_forward.1} parent=11 // pred_region
        _
      $region32: #{sceneflow_forward.1} parent=11 // pred_fallthru
        _
      // Predicated region
      $region33: #{sceneflow_forward.1} parent=11 // pred_check
        %p266 = pneg %p208
      $region34: #{sceneflow_forward.1} parent=11 // pred_check_branch
        %268 = sbr.rel (%p266) target = $region36
      $region35: #{sceneflow_forward.1} parent=11 // pred_region
        _
      $region36: #{sceneflow_forward.1} parent=11 // pred_fallthru
        _
    $region12: #{sceneflow_forward.1} parent=5 // pred_fallthru
      _
    %p269 = scmp.lt.s32.totalorder %s14, 2
    // Predicated region
    $region37: #{sceneflow_forward.1} parent=5 // pred_check
      %p270 = pneg %p269
    $region38: #{sceneflow_forward.1} parent=5 // pred_check_branch
      %272 = sbr.rel (%p270) target = $region40
    $region39: #{sceneflow_forward.1} parent=5 // pred_region
      // Predicated region
      $region41: #{sceneflow_forward.1} parent=39 // pred_check
        %p273 = pneg %p48
      $region42: #{sceneflow_forward.1} parent=39 // pred_check_branch
        %275 = sbr.rel (%p273) target = $region44
      $region43: #{sceneflow_forward.1} parent=39 // pred_region
        %s276 = smul.u32 2, %s22
        %p277 = scmp.lt.s32.totalorder %s21, 1
        %s278 = scalar_select %p277, %s21, 1
        %p279 = scmp.lt.s32.totalorder %s276, 1
        %s280 = scalar_select %p279, %s276, 1
        %s281 = smul.addr %s278, 2
        %s282 = sadd.s32 %s280, %s281
        %s283 = scalar_lea.vmem %s0, %s282
        %s284 = smul.u32 2, %s22
      $region44: #{sceneflow_forward.1} parent=39 // pred_fallthru
        _
      // Predicated region
      $region45: #{sceneflow_forward.1} parent=39 // pred_check
        %p285 = pneg %p76
      $region46: #{sceneflow_forward.1} parent=39 // pred_check_branch
        %287 = sbr.rel (%p285) target = $region48
      $region47: #{sceneflow_forward.1} parent=39 // pred_region
        %s288 = smul.u32 2, %s22
        %p289 = scmp.lt.s32.totalorder %s21, 1
        %s290 = scalar_select %p289, %s21, 1
        %p291 = scmp.lt.s32.totalorder %s288, 1
        %s292 = scalar_select %p291, %s288, 1
        %s293 = smul.addr %s290, 2
        %s294 = sadd.s32 %s292, %s293
        %s295 = smul.addr %s294, 4
        %s296 = scalar_lea.vmem %s1, %s295
        %s297 = smul.u32 2, %s22
      $region48: #{sceneflow_forward.1} parent=39 // pred_fallthru
        _
    $region40: #{sceneflow_forward.1} parent=5 // pred_fallthru
      _
    %p298 = scmp.le.s32.totalorder 1, %s14
    %p299 = scmp.lt.s32.totalorder %s14, 3
    %p300 = pnand %p298, %p299
    %p301 = pneg %p300
    // Predicated region
    $region49: #{sceneflow_forward.1} parent=5 // pred_check
      _
    $region50: #{sceneflow_forward.1} parent=5 // pred_check_branch
      %303 = sbr.rel (%p300) target = $region52
    $region51: #{sceneflow_forward.1} parent=5 // pred_region
      %s304 = ssub.s32 %s14, 1
      %s305 = smul.u32 2, %s24
      %p306 = scmp.lt.s32.totalorder %s23, 1
      %s307 = scalar_select %p306, %s23, 1
      %p308 = scmp.lt.s32.totalorder %s305, 1
      %s309 = scalar_select %p308, %s305, 1
      %s310 = smul.addr %s307, 2
      %s311 = sadd.s32 %s309, %s310
      %s312 = scalar_lea.vmem %s0, %s311
      %p313 = pneg %p54
      %p314 = pneg %p51
      %s315 = smul.u32 2, %s24
      %p316 = scmp.lt.s32.totalorder %s23, 1
      %s317 = scalar_select %p316, %s23, 1
      %p318 = scmp.lt.s32.totalorder %s315, 1
      %s319 = scalar_select %p318, %s315, 1
      %s320 = smul.addr %s317, 2
      %s321 = sadd.s32 %s319, %s320
      %s322 = smul.addr %s321, 4
      %s323 = scalar_lea.vmem %s1, %s322
      %p324 = pneg %p82
      %p325 = pneg %p79
      %p326 = pneg %p103
      %p327 = pneg %p100
      %p328 = pneg %p124
      %p329 = pneg %p121
      %p330 = pneg %p145
      %p331 = pneg %p142
      %p332 = pneg %p166
      %p333 = pneg %p163
      %p334 = pneg %p187
      %p335 = pneg %p184
      %p336 = pneg %p208
      %p337 = pneg %p205
      %p338 = pneg %p236
      %p339 = pneg %p233
      %s340 = smul.u32 2, %s24
      %p341 = scmp.lt.s32.totalorder %s23, 1
      %s342 = scalar_select %p341, %s23, 1
      %p343 = scmp.lt.s32.totalorder %s340, 1
      %s344 = scalar_select %p343, %s340, 1
      %s345 = smul.addr %s342, 2
      %s346 = sadd.s32 %s344, %s345
      %s347 = smul.addr %s346, 4
      %s348 = scalar_lea.vmem %s8, %s347
      %s349 = smul.u32 2, %s24
      %p350 = scmp.lt.s32.totalorder %s23, 1
      %s351 = scalar_select %p350, %s23, 1
      %p352 = scmp.lt.s32.totalorder %s349, 1
      %s353 = scalar_select %p352, %s349, 1
      %s354 = smul.addr %s351, 2
      %s355 = sadd.s32 %s353, %s354
      %s356 = scalar_lea.vmem %s0, %s355
      %s357 = smul.u32 2, %s24
      %s358 = smul.u32 2, %s24
      %p359 = scmp.lt.s32.totalorder %s23, 1
      %s360 = scalar_select %p359, %s23, 1
      %p361 = scmp.lt.s32.totalorder %s358, 1
      %s362 = scalar_select %p361, %s358, 1
      %s363 = smul.addr %s360, 2
      %s364 = sadd.s32 %s362, %s363
      %s365 = smul.addr %s364, 4
      %s366 = scalar_lea.vmem %s1, %s365
      %s367 = smul.u32 2, %s24
      %s368 = smul.u32 2, %s24
      %p369 = scmp.lt.s32.totalorder %s23, 1
      %s370 = scalar_select %p369, %s23, 1
      %p371 = scmp.lt.s32.totalorder %s368, 1
      %s372 = scalar_select %p371, %s368, 1
      %s373 = smul.addr %s370, 2
      %s374 = sadd.s32 %s372, %s373
      %s375 = smul.addr %s374, 4
      %s376 = scalar_lea.vmem %s8, %s375
      %s377 = smul.u32 2, %s24
      %v379 = vld [vmem:[%s366] sm:$0x77]
      %381 = vst [vmem:[#allocation1] ss:$2 sm:$0xff] %v379
      %v382 = vld.sshfl [vmem:[#allocation1] sm:$0xff pattern:$0x75316420]
      %v383 = vld.sshfl [vmem:[#allocation1 + $0x8] sm:$0xff pattern:$0x75316420]
      %v386 = vpack.c.bf16 %v382, %v382
      %v387 = vpack.c.bf16 %v383, %v383
      %v388 = vld [vmem:[%s356] sm:$0x3]
      %v389 = vld [vmem:[%s2] sm:$0xf]
      %v390 = vld [vmem:[%s2 + $0x4] sm:$0xf]
      %v391 = vld [vmem:[%s2 + $0x8] sm:$0xf]
      %v392 = vld [vmem:[%s2 + $0xc] sm:$0xf]
      %v393 = vld [vmem:[%s3] sm:$0xff]
      %v394 = vld [vmem:[%s3 + $0x8] sm:$0xff]
      %v395 = vld [vmem:[%s3 + $0x10] sm:$0xff]
      %v396 = vld [vmem:[%s3 + $0x18] sm:$0xff]
      %398 = vset.pattern.permute.xlu0 0
      %399 = vperm.xlu0 %398, %v393
      %v400 = vpop.permute.xlu0 %399
      %403 = vset.pattern.permute.xlu0 0
      %404 = vperm.xlu0 %403, %v394
      %v405 = vpop.permute.xlu0 %404
      %408 = vset.pattern.permute.xlu0 0
      %409 = vperm.xlu0 %408, %v395
      %v410 = vpop.permute.xlu0 %409
      %413 = vset.pattern.permute.xlu0 0
      %414 = vperm.xlu0 %413, %v396
      %v415 = vpop.permute.xlu0 %414
      %v418 = vperm.slane %v388, 0
      %v419 = vperm.slane %v388, 1
      %v422 = vmul.f32 %v400, %v418
      %v423 = vmul.f32 %v400, %v419
      %v424 = vmul.f32 %v405, %v418
      %v425 = vmul.f32 %v405, %v419
      %v426 = vmul.f32 %v410, %v418
      %v427 = vmul.f32 %v410, %v419
      %v428 = vmul.f32 %v415, %v418
      %v429 = vmul.f32 %v415, %v419
      %v434 = vunpack.c.l.b16 %v389
      %v435 = vunpack.c.l.b16 %v390
      %v436 = vunpack.c.l.b16 %v391
      %v437 = vunpack.c.l.b16 %v392
      %v438 = vpack.c.b16 %v435, %v434
      %v439 = vpack.c.b16 %v437, %v436
      %vm440 = vcmask 23552
      %v442 = vsel %vm440, %v438, 0
      %v445 = vsel %vm440, %v439, 0
      %vm447 = vcmask 1040384
      %vm448 = vcmask 1041408
      %v449 = vsel %vm447, 4294967295, 65535
      %v450 = vsel %vm448, %v449, 0
      %v452 = vand.u32 %v386, %v450
      %v455 = vand.u32 %v387, %v450
      %457 = vmatpush.bf16.msra.mxu0 0
      %458 = vmatpush.bf16.msra.mxu0 0
      %459 = vmatpush.bf16.msra.mxu0 0
      %460 = vmatpush.bf16.msra.mxu0 0
      %461 = vmatpush.bf16.msra.mxu0 0
      %462 = vmatpush.bf16.msra.mxu0 0
      %463 = vmatpush.bf16.msra.mxu0 0
      %464 = vmatpush.bf16.msra.mxu0 %v452
      %465 = vmatmul.bf16.gmra.mxu0 %v442
      %v466 = vpop.f32.mrf.mxu0
      %v467 = vadd.f32 %v422, %v466
      %v468 = vpop.f32.mrf.mxu0
      %v469 = vadd.f32 %v424, %v468
      %470 = vmatmul.bf16.gmra.mxu0 %v445
      %v471 = vpop.f32.mrf.mxu0
      %v472 = vadd.f32 %v426, %v471
      %v473 = vpop.f32.mrf.mxu0
      %v474 = vadd.f32 %v428, %v473
      %475 = vdwg.mxu0
      %476 = vmatpush.bf16.msra.mxu0 0
      %477 = vmatpush.bf16.msra.mxu0 0
      %478 = vmatpush.bf16.msra.mxu0 0
      %479 = vmatpush.bf16.msra.mxu0 0
      %480 = vmatpush.bf16.msra.mxu0 0
      %481 = vmatpush.bf16.msra.mxu0 0
      %482 = vmatpush.bf16.msra.mxu0 0
      %483 = vmatpush.bf16.msra.mxu0 %v455
      %484 = vmatmul.bf16.gmra.mxu0 %v442
      %v485 = vpop.f32.mrf.mxu0
      %v486 = vadd.f32 %v423, %v485
      %v487 = vpop.f32.mrf.mxu0
      %v488 = vadd.f32 %v425, %v487
      %489 = vmatmul.bf16.gmra.mxu0 %v445
      %v490 = vpop.f32.mrf.mxu0
      %v491 = vadd.f32 %v427, %v490
      %v492 = vpop.f32.mrf.mxu0
      %v493 = vadd.f32 %v429, %v492
      %494 = vdwg.mxu0
      %v495 = vpack.c.bf16 %v486, %v467
      %v496 = vpack.c.bf16 %v488, %v469
      %v497 = vpack.c.bf16 %v491, %v472
      %v498 = vpack.c.bf16 %v493, %v474
      %v499 = vld [vmem:[%s6] sm:$0xf]
      %v500 = vld [vmem:[%s6 + $0x4] sm:$0xf]
      %v501 = vld [vmem:[%s6 + $0x8] sm:$0xf]
      %v502 = vld [vmem:[%s6 + $0xc] sm:$0xf]
      %504 = vset.pattern.permute.xlu0 0
      %505 = vperm.xlu0 %504, %v499
      %v506 = vpop.permute.xlu0 %505
      %v509 = vunpack.c.l.s4 839922192
      %v510 = vunpack.c.0.s8 %v509
      %v511 = vperm.slane %v506, %v510
      %513 = vset.pattern.permute.xlu0 0
      %514 = vperm.xlu0 %513, %v500
      %v515 = vpop.permute.xlu0 %514
      %v518 = vunpack.c.l.s4 839922192
      %v519 = vunpack.c.0.s8 %v518
      %v520 = vperm.slane %v515, %v519
      %522 = vset.pattern.permute.xlu0 0
      %523 = vperm.xlu0 %522, %v501
      %v524 = vpop.permute.xlu0 %523
      %v527 = vunpack.c.l.s4 839922192
      %v528 = vunpack.c.0.s8 %v527
      %v529 = vperm.slane %v524, %v528
      %531 = vset.pattern.permute.xlu0 0
      %532 = vperm.xlu0 %531, %v502
      %v533 = vpop.permute.xlu0 %532
      %v536 = vunpack.c.l.s4 839922192
      %v537 = vunpack.c.0.s8 %v536
      %v538 = vperm.slane %v533, %v537
      %v539 = vunpack.c.l.bf16 %v495
      %v540 = vunpack.c.h.bf16 %v495
      %v541 = vunpack.c.l.bf16 %v496
      %v542 = vunpack.c.h.bf16 %v496
      %v543 = vunpack.c.l.bf16 %v497
      %v544 = vunpack.c.h.bf16 %v497
      %v545 = vunpack.c.l.bf16 %v498
      %v546 = vunpack.c.h.bf16 %v498
      %v547 = vunpack.c.l.bf16 %v511
      %v548 = vunpack.c.l.bf16 %v520
      %v549 = vunpack.c.l.bf16 %v529
      %v550 = vunpack.c.l.bf16 %v538
      %v551 = vadd.f32 %v539, %v547
      %v552 = vadd.f32 %v540, %v547
      %v553 = vadd.f32 %v541, %v548
      %v554 = vadd.f32 %v542, %v548
      %v555 = vadd.f32 %v543, %v549
      %v556 = vadd.f32 %v544, %v549
      %v557 = vadd.f32 %v545, %v550
      %v558 = vadd.f32 %v546, %v550
      %v559 = vpack.c.bf16 %v552, %v551
      %v560 = vpack.c.bf16 %v554, %v553
      %v561 = vpack.c.bf16 %v556, %v555
      %v562 = vpack.c.bf16 %v558, %v557
      %v563 = vunpack.c.l.bf16 %v559
      %v564 = vunpack.c.h.bf16 %v559
      %v565 = vunpack.c.l.bf16 %v560
      %v566 = vunpack.c.h.bf16 %v560
      %v567 = vunpack.c.l.bf16 %v561
      %v568 = vunpack.c.h.bf16 %v561
      %v569 = vunpack.c.l.bf16 %v562
      %v570 = vunpack.c.h.bf16 %v562
      %v571 = vmul.f32 %v563, 0.20019531
      %v572 = vmul.f32 %v564, 0.20019531
      %v573 = vmul.f32 %v565, 0.20019531
      %v574 = vmul.f32 %v566, 0.20019531
      %v575 = vmul.f32 %v567, 0.20019531
      %v576 = vmul.f32 %v568, 0.20019531
      %v577 = vmul.f32 %v569, 0.20019531
      %v578 = vmul.f32 %v570, 0.20019531
      %v579 = vpack.c.bf16 %v572, %v571
      %v580 = vpack.c.bf16 %v574, %v573
      %v581 = vpack.c.bf16 %v576, %v575
      %v582 = vpack.c.bf16 %v578, %v577
      %v583 = vunpack.c.l.bf16 %v579
      %v584 = vunpack.c.h.bf16 %v579
      %v585 = vunpack.c.l.bf16 %v580
      %v586 = vunpack.c.h.bf16 %v580
      %v587 = vunpack.c.l.bf16 %v581
      %v588 = vunpack.c.h.bf16 %v581
      %v589 = vunpack.c.l.bf16 %v582
      %v590 = vunpack.c.h.bf16 %v582
      %v591 = vmax.f32 %v563, %v583
      %v592 = vmax.f32 %v564, %v584
      %v593 = vmax.f32 %v565, %v585
      %v594 = vmax.f32 %v566, %v586
      %v595 = vmax.f32 %v567, %v587
      %v596 = vmax.f32 %v568, %v588
      %v597 = vmax.f32 %v569, %v589
      %v598 = vmax.f32 %v570, %v590
      %v599 = vpack.c.bf16 %v593, %v591
      %v600 = vpack.c.bf16 %v594, %v592
      %v601 = vpack.c.bf16 %v597, %v595
      %v602 = vpack.c.bf16 %v598, %v596
      %v603 = vld [vmem:[%s4] sm:$0xf]
      %v604 = vld [vmem:[%s4 + $0x4] sm:$0xf]
      %v605 = vld [vmem:[%s4 + $0x8] sm:$0xf]
      %v606 = vld [vmem:[%s4 + $0xc] sm:$0xf]
      %v611 = vunpack.c.l.b16 %v603
      %v612 = vunpack.c.l.b16 %v604
      %v613 = vunpack.c.l.b16 %v605
      %v614 = vunpack.c.l.b16 %v606
      %v615 = vpack.c.b16 %v612, %v611
      %v616 = vpack.c.b16 %v614, %v613
      %vm617 = vcmask 261120
      %v619 = vsel %vm617, %v615, 0
      %v622 = vsel %vm617, %v616, 0
      %624 = vmatpush.bf16.msra.mxu0 0
      %625 = vmatpush.bf16.msra.mxu0 0
      %626 = vmatpush.bf16.msra.mxu0 0
      %627 = vmatpush.bf16.msra.mxu0 0
      %628 = vmatpush.bf16.msra.mxu0 0
      %629 = vmatpush.bf16.msra.mxu0 0
      %630 = vmatpush.bf16.msra.mxu0 %v601
      %631 = vmatpush.bf16.msra.mxu0 %v599
      %632 = vmatmul.bf16.gmra.mxu0 %v619
      %v633 = vpop.f32.mrf.mxu0
      %v634 = vadd.f32 0.0, %v633
      %v635 = vpop.f32.mrf.mxu0
      %v636 = vadd.f32 0.0, %v635
      %637 = vmatmul.bf16.gmra.mxu0 %v622
      %v638 = vpop.f32.mrf.mxu0
      %v639 = vadd.f32 0.0, %v638
      %v640 = vpop.f32.mrf.mxu0
      %v641 = vadd.f32 0.0, %v640
      %642 = vdwg.mxu0
      %643 = vmatpush.bf16.msra.mxu0 0
      %644 = vmatpush.bf16.msra.mxu0 0
      %645 = vmatpush.bf16.msra.mxu0 0
      %646 = vmatpush.bf16.msra.mxu0 0
      %647 = vmatpush.bf16.msra.mxu0 0
      %648 = vmatpush.bf16.msra.mxu0 0
      %649 = vmatpush.bf16.msra.mxu0 %v602
      %650 = vmatpush.bf16.msra.mxu0 %v600
      %651 = vmatmul.bf16.gmra.mxu0 %v619
      %v652 = vpop.f32.mrf.mxu0
      %v653 = vadd.f32 0.0, %v652
      %v654 = vpop.f32.mrf.mxu0
      %v655 = vadd.f32 0.0, %v654
      %656 = vmatmul.bf16.gmra.mxu0 %v622
      %v657 = vpop.f32.mrf.mxu0
      %v658 = vadd.f32 0.0, %v657
      %v659 = vpop.f32.mrf.mxu0
      %v660 = vadd.f32 0.0, %v659
      %661 = vdwg.mxu0
      %v662 = vpack.c.bf16 %v653, %v634
      %v663 = vpack.c.bf16 %v655, %v636
      %v664 = vpack.c.bf16 %v658, %v639
      %v665 = vpack.c.bf16 %v660, %v641
      %s666 = scalar_lea.vmem %s6, 16
      %v667 = vld [vmem:[%s666] sm:$0xf]
      %v668 = vld [vmem:[%s666 + $0x4] sm:$0xf]
      %v669 = vld [vmem:[%s666 + $0x8] sm:$0xf]
      %v670 = vld [vmem:[%s666 + $0xc] sm:$0xf]
      %672 = vset.pattern.permute.xlu0 0
      %673 = vperm.xlu0 %672, %v667
      %v674 = vpop.permute.xlu0 %673
      %v677 = vunpack.c.l.s4 839922192
      %v678 = vunpack.c.0.s8 %v677
      %v679 = vperm.slane %v674, %v678
      %681 = vset.pattern.permute.xlu0 0
      %682 = vperm.xlu0 %681, %v668
      %v683 = vpop.permute.xlu0 %682
      %v686 = vunpack.c.l.s4 839922192
      %v687 = vunpack.c.0.s8 %v686
      %v688 = vperm.slane %v683, %v687
      %690 = vset.pattern.permute.xlu0 0
      %691 = vperm.xlu0 %690, %v669
      %v692 = vpop.permute.xlu0 %691
      %v695 = vunpack.c.l.s4 839922192
      %v696 = vunpack.c.0.s8 %v695
      %v697 = vperm.slane %v692, %v696
      %699 = vset.pattern.permute.xlu0 0
      %700 = vperm.xlu0 %699, %v670
      %v701 = vpop.permute.xlu0 %700
      %v704 = vunpack.c.l.s4 839922192
      %v705 = vunpack.c.0.s8 %v704
      %v706 = vperm.slane %v701, %v705
      %v707 = vunpack.c.l.bf16 %v662
      %v708 = vunpack.c.h.bf16 %v662
      %v709 = vunpack.c.l.bf16 %v663
      %v710 = vunpack.c.h.bf16 %v663
      %v711 = vunpack.c.l.bf16 %v664
      %v712 = vunpack.c.h.bf16 %v664
      %v713 = vunpack.c.l.bf16 %v665
      %v714 = vunpack.c.h.bf16 %v665
      %v715 = vunpack.c.l.bf16 %v679
      %v716 = vunpack.c.l.bf16 %v688
      %v717 = vunpack.c.l.bf16 %v697
      %v718 = vunpack.c.l.bf16 %v706
      %v719 = vadd.f32 %v707, %v715
      %v720 = vadd.f32 %v708, %v715
      %v721 = vadd.f32 %v709, %v716
      %v722 = vadd.f32 %v710, %v716
      %v723 = vadd.f32 %v711, %v717
      %v724 = vadd.f32 %v712, %v717
      %v725 = vadd.f32 %v713, %v718
      %v726 = vadd.f32 %v714, %v718
      %v727 = vpack.c.bf16 %v720, %v719
      %v728 = vpack.c.bf16 %v722, %v721
      %v729 = vpack.c.bf16 %v724, %v723
      %v730 = vpack.c.bf16 %v726, %v725
      %v731 = vunpack.c.l.bf16 %v727
      %v732 = vunpack.c.h.bf16 %v727
      %v733 = vunpack.c.l.bf16 %v728
      %v734 = vunpack.c.h.bf16 %v728
      %v735 = vunpack.c.l.bf16 %v729
      %v736 = vunpack.c.h.bf16 %v729
      %v737 = vunpack.c.l.bf16 %v730
      %v738 = vunpack.c.h.bf16 %v730
      %v739 = vmul.f32 %v731, 0.20019531
      %v740 = vmul.f32 %v732, 0.20019531
      %v741 = vmul.f32 %v733, 0.20019531
      %v742 = vmul.f32 %v734, 0.20019531
      %v743 = vmul.f32 %v735, 0.20019531
      %v744 = vmul.f32 %v736, 0.20019531
      %v745 = vmul.f32 %v737, 0.20019531
      %v746 = vmul.f32 %v738, 0.20019531
      %v747 = vpack.c.bf16 %v740, %v739
      %v748 = vpack.c.bf16 %v742, %v741
      %v749 = vpack.c.bf16 %v744, %v743
      %v750 = vpack.c.bf16 %v746, %v745
      %v751 = vunpack.c.l.bf16 %v747
      %v752 = vunpack.c.h.bf16 %v747
      %v753 = vunpack.c.l.bf16 %v748
      %v754 = vunpack.c.h.bf16 %v748
      %v755 = vunpack.c.l.bf16 %v749
      %v756 = vunpack.c.h.bf16 %v749
      %v757 = vunpack.c.l.bf16 %v750
      %v758 = vunpack.c.h.bf16 %v750
      %v759 = vmax.f32 %v731, %v751
      %v760 = vmax.f32 %v732, %v752
      %v761 = vmax.f32 %v733, %v753
      %v762 = vmax.f32 %v734, %v754
      %v763 = vmax.f32 %v735, %v755
      %v764 = vmax.f32 %v736, %v756
      %v765 = vmax.f32 %v737, %v757
      %v766 = vmax.f32 %v738, %v758
      %v767 = vpack.c.bf16 %v761, %v759
      %v768 = vpack.c.bf16 %v762, %v760
      %v769 = vpack.c.bf16 %v765, %v763
      %v770 = vpack.c.bf16 %v766, %v764
      %s771 = scalar_lea.vmem %s4, 16
      %v772 = vld [vmem:[%s771] sm:$0xf]
      %v773 = vld [vmem:[%s771 + $0x4] sm:$0xf]
      %v774 = vld [vmem:[%s771 + $0x8] sm:$0xf]
      %v775 = vld [vmem:[%s771 + $0xc] sm:$0xf]
      %v780 = vunpack.c.l.b16 %v772
      %v781 = vunpack.c.l.b16 %v773
      %v782 = vunpack.c.l.b16 %v774
      %v783 = vunpack.c.l.b16 %v775
      %v784 = vpack.c.b16 %v781, %v780
      %v785 = vpack.c.b16 %v783, %v782
      %v787 = vsel %vm617, %v784, 0
      %v790 = vsel %vm617, %v785, 0
      %792 = vmatpush.bf16.msra.mxu0 0
      %793 = vmatpush.bf16.msra.mxu0 0
      %794 = vmatpush.bf16.msra.mxu0 0
      %795 = vmatpush.bf16.msra.mxu0 0
      %796 = vmatpush.bf16.msra.mxu0 0
      %797 = vmatpush.bf16.msra.mxu0 0
      %798 = vmatpush.bf16.msra.mxu0 %v769
      %799 = vmatpush.bf16.msra.mxu0 %v767
      %800 = vmatmul.bf16.gmra.mxu0 %v787
      %v801 = vpop.f32.mrf.mxu0
      %v802 = vadd.f32 0.0, %v801
      %v803 = vpop.f32.mrf.mxu0
      %v804 = vadd.f32 0.0, %v803
      %805 = vmatmul.bf16.gmra.mxu0 %v790
      %v806 = vpop.f32.mrf.mxu0
      %v807 = vadd.f32 0.0, %v806
      %v808 = vpop.f32.mrf.mxu0
      %v809 = vadd.f32 0.0, %v808
      %810 = vdwg.mxu0
      %811 = vmatpush.bf16.msra.mxu0 0
      %812 = vmatpush.bf16.msra.mxu0 0
      %813 = vmatpush.bf16.msra.mxu0 0
      %814 = vmatpush.bf16.msra.mxu0 0
      %815 = vmatpush.bf16.msra.mxu0 0
      %816 = vmatpush.bf16.msra.mxu0 0
      %817 = vmatpush.bf16.msra.mxu0 %v770
      %818 = vmatpush.bf16.msra.mxu0 %v768
      %819 = vmatmul.bf16.gmra.mxu0 %v787
      %v820 = vpop.f32.mrf.mxu0
      %v821 = vadd.f32 0.0, %v820
      %v822 = vpop.f32.mrf.mxu0
      %v823 = vadd.f32 0.0, %v822
      %824 = vmatmul.bf16.gmra.mxu0 %v790
      %v825 = vpop.f32.mrf.mxu0
      %v826 = vadd.f32 0.0, %v825
      %v827 = vpop.f32.mrf.mxu0
      %v828 = vadd.f32 0.0, %v827
      %829 = vdwg.mxu0
      %v830 = vpack.c.bf16 %v821, %v802
      %v831 = vpack.c.bf16 %v823, %v804
      %v832 = vpack.c.bf16 %v826, %v807
      %v833 = vpack.c.bf16 %v828, %v809
      %s834 = scalar_lea.vmem %s6, 32
      %v835 = vld [vmem:[%s834] sm:$0xf]
      %v836 = vld [vmem:[%s834 + $0x4] sm:$0xf]
      %v837 = vld [vmem:[%s834 + $0x8] sm:$0xf]
      %v838 = vld [vmem:[%s834 + $0xc] sm:$0xf]
      %840 = vset.pattern.permute.xlu0 0
      %841 = vperm.xlu0 %840, %v835
      %v842 = vpop.permute.xlu0 %841
      %v845 = vunpack.c.l.s4 839922192
      %v846 = vunpack.c.0.s8 %v845
      %v847 = vperm.slane %v842, %v846
      %849 = vset.pattern.permute.xlu0 0
      %850 = vperm.xlu0 %849, %v836
      %v851 = vpop.permute.xlu0 %850
      %v854 = vunpack.c.l.s4 839922192
      %v855 = vunpack.c.0.s8 %v854
      %v856 = vperm.slane %v851, %v855
      %858 = vset.pattern.permute.xlu0 0
      %859 = vperm.xlu0 %858, %v837
      %v860 = vpop.permute.xlu0 %859
      %v863 = vunpack.c.l.s4 839922192
      %v864 = vunpack.c.0.s8 %v863
      %v865 = vperm.slane %v860, %v864
      %867 = vset.pattern.permute.xlu0 0
      %868 = vperm.xlu0 %867, %v838
      %v869 = vpop.permute.xlu0 %868
      %v872 = vunpack.c.l.s4 839922192
      %v873 = vunpack.c.0.s8 %v872
      %v874 = vperm.slane %v869, %v873
      %v875 = vunpack.c.l.bf16 %v830
      %v876 = vunpack.c.h.bf16 %v830
      %v877 = vunpack.c.l.bf16 %v831
      %v878 = vunpack.c.h.bf16 %v831
      %v879 = vunpack.c.l.bf16 %v832
      %v880 = vunpack.c.h.bf16 %v832
      %v881 = vunpack.c.l.bf16 %v833
      %v882 = vunpack.c.h.bf16 %v833
      %v883 = vunpack.c.l.bf16 %v847
      %v884 = vunpack.c.l.bf16 %v856
      %v885 = vunpack.c.l.bf16 %v865
      %v886 = vunpack.c.l.bf16 %v874
      %v887 = vadd.f32 %v875, %v883
      %v888 = vadd.f32 %v876, %v883
      %v889 = vadd.f32 %v877, %v884
      %v890 = vadd.f32 %v878, %v884
      %v891 = vadd.f32 %v879, %v885
      %v892 = vadd.f32 %v880, %v885
      %v893 = vadd.f32 %v881, %v886
      %v894 = vadd.f32 %v882, %v886
      %v895 = vpack.c.bf16 %v888, %v887
      %v896 = vpack.c.bf16 %v890, %v889
      %v897 = vpack.c.bf16 %v892, %v891
      %v898 = vpack.c.bf16 %v894, %v893
      %v899 = vunpack.c.l.bf16 %v895
      %v900 = vunpack.c.h.bf16 %v895
      %v901 = vunpack.c.l.bf16 %v896
      %v902 = vunpack.c.h.bf16 %v896
      %v903 = vunpack.c.l.bf16 %v897
      %v904 = vunpack.c.h.bf16 %v897
      %v905 = vunpack.c.l.bf16 %v898
      %v906 = vunpack.c.h.bf16 %v898
      %v907 = vmul.f32 %v899, 0.20019531
      %v908 = vmul.f32 %v900, 0.20019531
      %v909 = vmul.f32 %v901, 0.20019531
      %v910 = vmul.f32 %v902, 0.20019531
      %v911 = vmul.f32 %v903, 0.20019531
      %v912 = vmul.f32 %v904, 0.20019531
      %v913 = vmul.f32 %v905, 0.20019531
      %v914 = vmul.f32 %v906, 0.20019531
      %v915 = vpack.c.bf16 %v908, %v907
      %v916 = vpack.c.bf16 %v910, %v909
      %v917 = vpack.c.bf16 %v912, %v911
      %v918 = vpack.c.bf16 %v914, %v913
      %v919 = vunpack.c.l.bf16 %v915
      %v920 = vunpack.c.h.bf16 %v915
      %v921 = vunpack.c.l.bf16 %v916
      %v922 = vunpack.c.h.bf16 %v916
      %v923 = vunpack.c.l.bf16 %v917
      %v924 = vunpack.c.h.bf16 %v917
      %v925 = vunpack.c.l.bf16 %v918
      %v926 = vunpack.c.h.bf16 %v918
      %v927 = vmax.f32 %v899, %v919
      %v928 = vmax.f32 %v900, %v920
      %v929 = vmax.f32 %v901, %v921
      %v930 = vmax.f32 %v902, %v922
      %v931 = vmax.f32 %v903, %v923
      %v932 = vmax.f32 %v904, %v924
      %v933 = vmax.f32 %v905, %v925
      %v934 = vmax.f32 %v906, %v926
      %v935 = vpack.c.bf16 %v929, %v927
      %v936 = vpack.c.bf16 %v930, %v928
      %v937 = vpack.c.bf16 %v933, %v931
      %v938 = vpack.c.bf16 %v934, %v932
      %s939 = scalar_lea.vmem %s4, 32
      %v940 = vld [vmem:[%s939] sm:$0xf]
      %v941 = vld [vmem:[%s939 + $0x4] sm:$0xf]
      %v942 = vld [vmem:[%s939 + $0x8] sm:$0xf]
      %v943 = vld [vmem:[%s939 + $0xc] sm:$0xf]
      %v948 = vunpack.c.l.b16 %v940
      %v949 = vunpack.c.l.b16 %v941
      %v950 = vunpack.c.l.b16 %v942
      %v951 = vunpack.c.l.b16 %v943
      %v952 = vpack.c.b16 %v949, %v948
      %v953 = vpack.c.b16 %v951, %v950
      %v955 = vsel %vm617, %v952, 0
      %v958 = vsel %vm617, %v953, 0
      %960 = vmatpush.bf16.msra.mxu0 0
      %961 = vmatpush.bf16.msra.mxu0 0
      %962 = vmatpush.bf16.msra.mxu0 0
      %963 = vmatpush.bf16.msra.mxu0 0
      %964 = vmatpush.bf16.msra.mxu0 0
      %965 = vmatpush.bf16.msra.mxu0 0
      %966 = vmatpush.bf16.msra.mxu0 %v937
      %967 = vmatpush.bf16.msra.mxu0 %v935
      %968 = vmatmul.bf16.gmra.mxu0 %v955
      %v969 = vpop.f32.mrf.mxu0
      %v970 = vadd.f32 0.0, %v969
      %v971 = vpop.f32.mrf.mxu0
      %v972 = vadd.f32 0.0, %v971
      %973 = vmatmul.bf16.gmra.mxu0 %v958
      %v974 = vpop.f32.mrf.mxu0
      %v975 = vadd.f32 0.0, %v974
      %v976 = vpop.f32.mrf.mxu0
      %v977 = vadd.f32 0.0, %v976
      %978 = vdwg.mxu0
      %979 = vmatpush.bf16.msra.mxu0 0
      %980 = vmatpush.bf16.msra.mxu0 0
      %981 = vmatpush.bf16.msra.mxu0 0
      %982 = vmatpush.bf16.msra.mxu0 0
      %983 = vmatpush.bf16.msra.mxu0 0
      %984 = vmatpush.bf16.msra.mxu0 0
      %985 = vmatpush.bf16.msra.mxu0 %v938
      %986 = vmatpush.bf16.msra.mxu0 %v936
      %987 = vmatmul.bf16.gmra.mxu0 %v955
      %v988 = vpop.f32.mrf.mxu0
      %v989 = vadd.f32 0.0, %v988
      %v990 = vpop.f32.mrf.mxu0
      %v991 = vadd.f32 0.0, %v990
      %992 = vmatmul.bf16.gmra.mxu0 %v958
      %v993 = vpop.f32.mrf.mxu0
      %v994 = vadd.f32 0.0, %v993
      %v995 = vpop.f32.mrf.mxu0
      %v996 = vadd.f32 0.0, %v995
      %997 = vdwg.mxu0
      %v998 = vpack.c.bf16 %v989, %v970
      %v999 = vpack.c.bf16 %v991, %v972
      %v1000 = vpack.c.bf16 %v994, %v975
      %v1001 = vpack.c.bf16 %v996, %v977
      %s1002 = scalar_lea.vmem %s6, 48
      %v1003 = vld [vmem:[%s1002] sm:$0xf]
      %v1004 = vld [vmem:[%s1002 + $0x4] sm:$0xf]
      %v1005 = vld [vmem:[%s1002 + $0x8] sm:$0xf]
      %v1006 = vld [vmem:[%s1002 + $0xc] sm:$0xf]
      %1008 = vset.pattern.permute.xlu0 0
      %1009 = vperm.xlu0 %1008, %v1003
      %v1010 = vpop.permute.xlu0 %1009
      %v1013 = vunpack.c.l.s4 839922192
      %v1014 = vunpack.c.0.s8 %v1013
      %v1015 = vperm.slane %v1010, %v1014
      %1017 = vset.pattern.permute.xlu0 0
      %1018 = vperm.xlu0 %1017, %v1004
      %v1019 = vpop.permute.xlu0 %1018
      %v1022 = vunpack.c.l.s4 839922192
      %v1023 = vunpack.c.0.s8 %v1022
      %v1024 = vperm.slane %v1019, %v1023
      %1026 = vset.pattern.permute.xlu0 0
      %1027 = vperm.xlu0 %1026, %v1005
      %v1028 = vpop.permute.xlu0 %1027
      %v1031 = vunpack.c.l.s4 839922192
      %v1032 = vunpack.c.0.s8 %v1031
      %v1033 = vperm.slane %v1028, %v1032
      %1035 = vset.pattern.permute.xlu0 0
      %1036 = vperm.xlu0 %1035, %v1006
      %v1037 = vpop.permute.xlu0 %1036
      %v1040 = vunpack.c.l.s4 839922192
      %v1041 = vunpack.c.0.s8 %v1040
      %v1042 = vperm.slane %v1037, %v1041
      %v1043 = vunpack.c.l.bf16 %v998
      %v1044 = vunpack.c.h.bf16 %v998
      %v1045 = vunpack.c.l.bf16 %v999
      %v1046 = vunpack.c.h.bf16 %v999
      %v1047 = vunpack.c.l.bf16 %v1000
      %v1048 = vunpack.c.h.bf16 %v1000
      %v1049 = vunpack.c.l.bf16 %v1001
      %v1050 = vunpack.c.h.bf16 %v1001
      %v1051 = vunpack.c.l.bf16 %v1015
      %v1052 = vunpack.c.l.bf16 %v1024
      %v1053 = vunpack.c.l.bf16 %v1033
      %v1054 = vunpack.c.l.bf16 %v1042
      %v1055 = vadd.f32 %v1043, %v1051
      %v1056 = vadd.f32 %v1044, %v1051
      %v1057 = vadd.f32 %v1045, %v1052
      %v1058 = vadd.f32 %v1046, %v1052
      %v1059 = vadd.f32 %v1047, %v1053
      %v1060 = vadd.f32 %v1048, %v1053
      %v1061 = vadd.f32 %v1049, %v1054
      %v1062 = vadd.f32 %v1050, %v1054
      %v1063 = vpack.c.bf16 %v1056, %v1055
      %v1064 = vpack.c.bf16 %v1058, %v1057
      %v1065 = vpack.c.bf16 %v1060, %v1059
      %v1066 = vpack.c.bf16 %v1062, %v1061
      %v1067 = vunpack.c.l.bf16 %v1063
      %v1068 = vunpack.c.h.bf16 %v1063
      %v1069 = vunpack.c.l.bf16 %v1064
      %v1070 = vunpack.c.h.bf16 %v1064
      %v1071 = vunpack.c.l.bf16 %v1065
      %v1072 = vunpack.c.h.bf16 %v1065
      %v1073 = vunpack.c.l.bf16 %v1066
      %v1074 = vunpack.c.h.bf16 %v1066
      %v1075 = vmul.f32 %v1067, 0.20019531
      %v1076 = vmul.f32 %v1068, 0.20019531
      %v1077 = vmul.f32 %v1069, 0.20019531
      %v1078 = vmul.f32 %v1070, 0.20019531
      %v1079 = vmul.f32 %v1071, 0.20019531
      %v1080 = vmul.f32 %v1072, 0.20019531
      %v1081 = vmul.f32 %v1073, 0.20019531
      %v1082 = vmul.f32 %v1074, 0.20019531
      %v1083 = vpack.c.bf16 %v1076, %v1075
      %v1084 = vpack.c.bf16 %v1078, %v1077
      %v1085 = vpack.c.bf16 %v1080, %v1079
      %v1086 = vpack.c.bf16 %v1082, %v1081
      %v1087 = vunpack.c.l.bf16 %v1083
      %v1088 = vunpack.c.h.bf16 %v1083
      %v1089 = vunpack.c.l.bf16 %v1084
      %v1090 = vunpack.c.h.bf16 %v1084
      %v1091 = vunpack.c.l.bf16 %v1085
      %v1092 = vunpack.c.h.bf16 %v1085
      %v1093 = vunpack.c.l.bf16 %v1086
      %v1094 = vunpack.c.h.bf16 %v1086
      %v1095 = vmax.f32 %v1067, %v1087
      %v1096 = vmax.f32 %v1068, %v1088
      %v1097 = vmax.f32 %v1069, %v1089
      %v1098 = vmax.f32 %v1070, %v1090
      %v1099 = vmax.f32 %v1071, %v1091
      %v1100 = vmax.f32 %v1072, %v1092
      %v1101 = vmax.f32 %v1073, %v1093
      %v1102 = vmax.f32 %v1074, %v1094
      %v1103 = vpack.c.bf16 %v1097, %v1095
      %v1104 = vpack.c.bf16 %v1098, %v1096
      %v1105 = vpack.c.bf16 %v1101, %v1099
      %v1106 = vpack.c.bf16 %v1102, %v1100
      %v1107 = vld [vmem:[%s5] sm:$0x3]
      %v1108 = vld [vmem:[%s7] sm:$0x7]
      %1110 = vset.pattern.permute.xlu0 0
      %1111 = vperm.xlu0 %1110, %v1108
      %v1112 = vpop.permute.xlu0 %1111
      %v1115 = vsel %vm617, %v1107, 0
      %1117 = vmatpush.bf16.msra.mxu0 0
      %1118 = vmatpush.bf16.msra.mxu0 0
      %1119 = vmatpush.bf16.msra.mxu0 0
      %1120 = vmatpush.bf16.msra.mxu0 0
      %1121 = vmatpush.bf16.msra.mxu0 0
      %1122 = vmatpush.bf16.msra.mxu0 0
      %1123 = vmatpush.bf16.msra.mxu0 %v1105
      %1124 = vmatpush.bf16.msra.mxu0 %v1103
      %1125 = vmatmul.bf16.gmra.mxu0 %v1115
      %v1126 = vpop.f32.mrf.mxu0
      %v1127 = vadd.f32 %v1112, %v1126
      %v1128 = vpop.f32.mrf.mxu0
      %1129 = vdwg.mxu0
      %1130 = vmatpush.bf16.msra.mxu0 0
      %1131 = vmatpush.bf16.msra.mxu0 0
      %1132 = vmatpush.bf16.msra.mxu0 0
      %1133 = vmatpush.bf16.msra.mxu0 0
      %1134 = vmatpush.bf16.msra.mxu0 0
      %1135 = vmatpush.bf16.msra.mxu0 0
      %1136 = vmatpush.bf16.msra.mxu0 %v1106
      %1137 = vmatpush.bf16.msra.mxu0 %v1104
      %1138 = vmatmul.bf16.gmra.mxu0 %v1115
      %v1139 = vpop.f32.mrf.mxu0
      %v1140 = vadd.f32 %v1112, %v1139
      %v1141 = vpop.f32.mrf.mxu0
      %1142 = vdwg.mxu0
      %v1145 = vrot.slane %v1140, 4
      %vm1146 = vcmask 1043456
      %v1147 = vsel %vm1146, %v1127, %v1145
      %1149 = vst [vmem:[%s376] sm:$0x77] %v1147
      %s1150 = smul.u32 2, %s24
      %p1151 = scmp.lt.s32.totalorder %s23, 1
      %s1152 = scalar_select %p1151, %s23, 1
      %p1153 = scmp.lt.s32.totalorder %s1150, 1
      %s1154 = scalar_select %p1153, %s1150, 1
      %s1155 = smul.addr %s1152, 2
      %s1156 = sadd.s32 %s1154, %s1155
      %s1157 = smul.addr %s1156, 4
      %s1158 = scalar_lea.vmem %s8, %s1157
      // Predicated region
      $region53: #{sceneflow_forward.1} parent=51 // pred_check
        %p1159 = pneg %p233
      $region54: #{sceneflow_forward.1} parent=51 // pred_check_branch
        %1161 = sbr.rel (%p1159) target = $region56
      $region55: #{sceneflow_forward.1} parent=51 // pred_region
        %s1162 = smul.u32 2, %s24
      $region56: #{sceneflow_forward.1} parent=51 // pred_fallthru
        _
    $region52: #{sceneflow_forward.1} parent=5 // pred_fallthru
      _
    %p1163 = scmp.le.s32.totalorder 2, %s14
    // Predicated region
    $region57: #{sceneflow_forward.1} parent=5 // pred_check
      %p1164 = pneg %p1163
    $region58: #{sceneflow_forward.1} parent=5 // pred_check_branch
      %1166 = sbr.rel (%p1164) target = $region60
    $region59: #{sceneflow_forward.1} parent=5 // pred_region
      %s1167 = ssub.s32 %s14, 2
      // Predicated region
      $region61: #{sceneflow_forward.1} parent=59 // pred_check
        %p1168 = pneg %p239
      $region62: #{sceneflow_forward.1} parent=59 // pred_check_branch
        %1170 = sbr.rel (%p1168) target = $region64
      $region63: #{sceneflow_forward.1} parent=59 // pred_region
        %s1171 = smul.u32 2, %s26
        %p1172 = scmp.lt.s32.totalorder %s25, 1
        %s1173 = scalar_select %p1172, %s25, 1
        %p1174 = scmp.lt.s32.totalorder %s1171, 1
        %s1175 = scalar_select %p1174, %s1171, 1
        %s1176 = smul.addr %s1173, 2
        %s1177 = sadd.s32 %s1175, %s1176
        %s1178 = smul.addr %s1177, 4
        %s1179 = scalar_lea.vmem %s8, %s1178
      $region64: #{sceneflow_forward.1} parent=59 // pred_fallthru
        _
    $region60: #{sceneflow_forward.1} parent=5 // pred_fallthru
      _
  $region6: #{sceneflow_forward.1} parent=0 // loop_footer
    %s18 = sadd.s32 1, %s14
  $region7: #{sceneflow_forward.1} parent=0 // loop_footer_branch
    %13 = sbr.rel target = $region3
  $region8: #{sceneflow_forward.1} parent=0 // loop_exit
    _

</llo_original>
